<compile_context>
chip_gen: v7x
topology: tpu7x:2x2x1
jax: 0.10.0
libtpu: 0.0.40
codegen_flags: <defaults>
</compile_context>

<pallas_src>
import math

import jax
import jax.numpy as jnp
from jax import lax
from jax.experimental import pallas as pl
from jax.experimental.pallas import tpu as pltpu

LOG_2PI = math.log(2.0 * math.pi)
_LANE = 128
_SUBLANE = 8
_DEFAULT_TILE_BUDGET = 8 * 1024 * 1024   # per-step input bytes (Pallas double-buffers it)


def _round_up(x, m):
    return ((x + m - 1) // m) * m


def _sumsq_into(ref, valid, acc):
    """acc += row-wise sum of squares of the first `valid` columns of `ref`.

    `ref` is a (TB, TL) VMEM tile view with TL a multiple of 128, `valid` a Python int
    <= TL, `acc` a (TB, 128) f32 register block. Columns >= valid may hold stale VMEM
    garbage (ragged trailing block) and are masked out before squaring.
    """
    full = valid // _LANE
    tail = valid % _LANE

    def chunk(off):
        return ref[:, pl.ds(off, _LANE)].astype(jnp.float32)

    if 0 < full <= 4:                      # short static loop: fully visible to the scheduler
        for c in range(full):
            v = chunk(c * _LANE)
            acc = acc + v * v
    elif full > 4:
        def body(c, a):
            v = chunk(pl.multiple_of(c * _LANE, _LANE))
            return a + v * v
        acc = lax.fori_loop(0, full, body, acc, unroll=2)

    if tail > 0:
        # A full 128-wide read stays inside the tile (TL is a multiple of 128);
        # select 0 for the stale columns before squaring (also neutralizes NaN/Inf).
        v = chunk(full * _LANE)
        lane = lax.broadcasted_iota(jnp.int32, v.shape, dimension=1)
        v = jnp.where(lane < tail, v, 0.0)
        acc = acc + v * v
    return acc


def _make_kernel(nj, tl_x, tl_h, l_x, l_h, c_mask, c_final):
    """c_mask = 0.5*log(2*pi)*(Dx+Dh), c_final = 0.5*Dx*log(2*pi)."""
    rem_x = l_x - (nj - 1) * tl_x          # valid columns in the last reduction tile
    rem_h = l_h - (nj - 1) * tl_h
    ragged_last = (rem_x != tl_x) or (rem_h != tl_h)

    def kernel(zx_ref, zh_ref, n_ref, out_ref, acc_ref):
        j = pl.program_id(1)

        @pl.when(j == 0)
        def _init():
            acc_ref[...] = jnp.zeros_like(acc_ref)

        def accumulate(vx, vh):
            acc = acc_ref[...]
            acc = _sumsq_into(zx_ref, vx, acc)
            acc = _sumsq_into(zh_ref, vh, acc)
            acc_ref[...] = acc

        if nj == 1:
            accumulate(rem_x, rem_h)
        elif ragged_last:
            @pl.when(j < nj - 1)
            def _full_tiles():
                accumulate(tl_x, tl_h)

            @pl.when(j == nj - 1)
            def _last_tile():
                accumulate(rem_x, rem_h)
        else:
            accumulate(tl_x, tl_h)

        @pl.when(j == nj - 1)
        def _finalize():
            total = jnp.sum(acc_ref[...], axis=-1, keepdims=True)      # (TB, 1)
            out_ref[...] = (-0.5 * total - c_mask * n_ref[...] + c_final
                            ).astype(out_ref.dtype)

    return kernel


def position_feature_prior_forward(z_x, z_h, node_mask,
                                   tile_budget_bytes=_DEFAULT_TILE_BUDGET):
    """Returns log_pz with shape (B,). z_x/z_h keep their dtype (bf16 ok); math is f32.

    Assumes z_x and z_h are exactly zero outside node_mask (the PyTorch module asserts
    this); unmasked inputs give different results, as would the PyTorch assert-failure.
    """
    assert z_x.ndim == 3 and z_h.ndim == 3 and node_mask.ndim == 3
    assert node_mask.shape[:2] == z_x.shape[:2] == z_h.shape[:2]

    B, N, Dx = z_x.shape
    Dh = z_h.shape[-1]
    Lx, Lh = N * Dx, N * Dh
    isx = jnp.dtype(z_x.dtype).itemsize
    ish = jnp.dtype(z_h.dtype).itemsize

    # Per-row node count (tiny XLA reduce) replaces streaming the f32 mask in-kernel.
    n_count = jnp.sum(node_mask.astype(jnp.float32), axis=(1, 2)).reshape(B, 1)

    # Row-major collapse of contiguous trailing dims — no data copy, no padding.
    zx2 = z_x.reshape(B, Lx)
    zh2 = z_h.reshape(B, Lh)

    # ---- batch tiling: cap at 128 rows so the (TB,128) f32 accumulator + per-chunk
    # vregs fit the register file. Ragged last batch block is fine (rows independent,
    # OOB output rows never written back). ----
    TB = B if B <= 128 else 128
    nb = pl.cdiv(B, TB)

    # ---- reduction (lane) tiling: block widths are multiples of 128 so the in-kernel
    # 128-wide chunk reads always stay inside the VMEM tile. ----
    row_bytes = _round_up(Lx, _LANE) * isx + _round_up(Lh, _LANE) * ish
    if TB * row_bytes <= tile_budget_bytes:
        nj, TLx, TLh = 1, _round_up(Lx, _LANE), _round_up(Lh, _LANE)
    else:
        per_node = TB * (Dx * isx + Dh * ish)
        TN = max(_LANE, (tile_budget_bytes // per_node) // _LANE * _LANE)
        if TN >= N:
            nj, TLx, TLh = 1, _round_up(Lx, _LANE), _round_up(Lh, _LANE)
        else:
            nj, TLx, TLh = pl.cdiv(N, TN), TN * Dx, TN * Dh

    # Very wide feature dims can make even the minimum node tile exceed the budget;
    # shrink the batch tile (multiple of 8) instead of overflowing VMEM.
    while nj > 1 and TB > _SUBLANE and 2 * TB * (TLx * isx + TLh * ish) > (40 << 20):
        TB = max(_SUBLANE, (TB // 2) // _SUBLANE * _SUBLANE)
        nb = pl.cdiv(B, TB)

    kernel = _make_kernel(nj, TLx, TLh, Lx, Lh,
                          0.5 * LOG_2PI * (Dx + Dh), 0.5 * Dx * LOG_2PI)

    # Explicit VMEM limit from the actual double-buffered footprint (+ headroom).
    vmem_need = (2 * TB * (TLx * isx + TLh * ish)   # double-buffered z_x / z_h tiles
                 + 4 * TB * 4                       # n_count + out (double-buffered)
                 + TB * _LANE * 4)                  # accumulator scratch
    vmem_limit = int(vmem_need) + (16 << 20)

    cost = pl.CostEstimate(
        flops=2 * B * (Lx + Lh) + 4 * B,
        transcendentals=0,
        bytes_accessed=int(B * (Lx * isx + Lh * ish) + B * 8),
    )

    out = pl.pallas_call(
        kernel,
        out_shape=jax.ShapeDtypeStruct((B, 1), jnp.float32),
        grid_spec=pltpu.PrefetchScalarGridSpec(
            num_scalar_prefetch=0,
            grid=(nb, nj),                           # reduction (lane) axis last
            in_specs=[
                pl.BlockSpec((TB, TLx), lambda i, j: (i, j)),
                pl.BlockSpec((TB, TLh), lambda i, j: (i, j)),
                pl.BlockSpec((TB, 1), lambda i, j: (i, 0)),
            ],
            out_specs=pl.BlockSpec((TB, 1), lambda i, j: (i, 0)),
            scratch_shapes=[pltpu.VMEM((TB, _LANE), jnp.float32)],
        ),
        compiler_params=pltpu.CompilerParams(
            dimension_semantics=("parallel", "arbitrary"),
            vmem_limit_bytes=vmem_limit),
        cost_estimate=cost,
    )(zx2, zh2, n_count)

    return out[:, 0]


def _reference_forward(z_x, z_h, node_mask):
    """Pure-JAX reference mirroring the PyTorch code, for verification."""
    m = node_mask.astype(jnp.float32)
    z_x = z_x.astype(jnp.float32)
    z_h = z_h.astype(jnp.float32)
    dx = z_x.shape[-1]
    r2 = jnp.sum(z_x * z_x, axis=(1, 2))
    n = jnp.sum(m, axis=(1, 2))
    log_pz_x = -0.5 * r2 - 0.5 * (n - 1.0) * dx * LOG_2PI
    log_pz_h = jnp.sum((-0.5 * z_h * z_h - 0.5 * LOG_2PI) * m, axis=(1, 2))
    return log_pz_x + log_pz_h


def _make_inputs(key, B, N, n_dim, in_node_nf, lengths, dtype=jnp.float32):
    k1, k2 = jax.random.split(key, 2)
    node_mask = (jnp.arange(N)[None, :] < jnp.asarray(lengths)[:, None]
                 ).astype(jnp.float32)[:, :, None]                          # (B, N, 1)
    z_x = jax.random.normal(k1, (B, N, n_dim), dtype=jnp.float32) * node_mask
    cog = jnp.sum(z_x, axis=1, keepdims=True) / jnp.sum(node_mask, axis=1, keepdims=True)
    z_x = (z_x - cog) * node_mask                                            # CoG-free, masked
    z_h = jax.random.normal(k2, (B, N, in_node_nf), dtype=jnp.float32) * node_mask
    return z_x.astype(dtype), z_h.astype(dtype), node_mask


if __name__ == "__main__":
    key = jax.random.PRNGKey(0)
    k0, k1, k2 = jax.random.split(key, 3)
    n_dim, in_node_nf = 3, 5

    # Case 1: small f32 shapes, single reduction tile, masked lane tails (24 / 40 cols).
    B, N = 2, 8
    z_x, z_h, node_mask = _make_inputs(k0, B, N, n_dim, in_node_nf, [6, 8])
    got = jax.block_until_ready(position_feature_prior_forward(z_x, z_h, node_mask))
    ref = _reference_forward(z_x, z_h, node_mask)
    assert got.shape == (B,)
    assert jnp.allclose(got, ref, rtol=1e-5, atol=1e-4), (got, ref)

    # Case 2: bf16 inputs + multi-step reduction grid with a ragged last node tile
    # (tiny budget forces nj > 1 and exercises both fold paths).
    B2, N2 = 2, 300
    z_x2, z_h2, node_mask2 = _make_inputs(k1, B2, N2, n_dim, in_node_nf, [200, 300],
                                          dtype=jnp.bfloat16)
    got2 = jax.block_until_ready(
        position_feature_prior_forward(z_x2, z_h2, node_mask2,
                                       tile_budget_bytes=4 * 1024))
    ref2 = _reference_forward(z_x2, z_h2, node_mask2)
    assert got2.shape == (B2,)
    assert jnp.allclose(got2, ref2, rtol=1e-4, atol=1e-2), (got2, ref2)

    # Case 3: batch larger than one block (ragged trailing batch block, no padding).
    B3, N3 = 130, 16
    lengths3 = [(i % N3) + 1 for i in range(B3)]
    z_x3, z_h3, node_mask3 = _make_inputs(k2, B3, N3, n_dim, in_node_nf, lengths3)
    got3 = jax.block_until_ready(position_feature_prior_forward(z_x3, z_h3, node_mask3))
    ref3 = _reference_forward(z_x3, z_h3, node_mask3)
    assert got3.shape == (B3,)
    assert jnp.allclose(got3, ref3, rtol=1e-5, atol=1e-4), (got3, ref3)

    print("KERNEL_OK")
</pallas_src>

<mosaic_0001>
module attributes {stable_mosaic.version = 11 : i64} {
  func.func @kernel(%arg0: i32, %arg1: i32, %arg2: memref<2x128xf32, #tpu.memory_space<vmem>>, %arg3: memref<2x128xf32, #tpu.memory_space<vmem>>, %arg4: memref<2x1xf32, #tpu.memory_space<vmem>>, %arg5: memref<2x1xf32, #tpu.memory_space<vmem>>, %arg6: memref<2x128xf32, #tpu.memory_space<vmem>>) attributes {dimension_semantics = [#tpu.dimension_semantics<parallel>, #tpu.dimension_semantics<arbitrary>], iteration_bounds = array<i64: 1, 1>, scalar_prefetch = 0 : i64, scratch_operands = 1 : i64, tpu.core_type = #tpu.core_type<tc>, window_params = [{transform_indices = @transform_0, window_bounds = array<i64: 2, 128>}, {transform_indices = @transform_1, window_bounds = array<i64: 2, 128>}, {transform_indices = @transform_2, window_bounds = array<i64: 2, 1>}, {transform_indices = @transform_3, window_bounds = array<i64: 2, 1>}]} {
    %c0_i32 = arith.constant 0 : i32
    %0 = arith.cmpi eq, %arg1, %c0_i32 : i32
    %1 = arith.extui %0 : i1 to i32
    %c0_i32_0 = arith.constant 0 : i32
    %2 = arith.cmpi ne, %1, %c0_i32_0 : i32
    scf.if %2 {
      %cst_11 = arith.constant 0.000000e+00 : f32
      %24 = vector.broadcast %cst_11 : f32 to vector<2x128xf32>
      %c0_12 = arith.constant 0 : index
      %c0_13 = arith.constant 0 : index
      %25 = vector.load %arg6[%c0_12, %c0_13] : memref<2x128xf32, #tpu.memory_space<vmem>>, vector<2x128xf32>
      tpu.vector_store %arg6[%c0_12, %c0_13], %24 {strides = array<i32>} : memref<2x128xf32, #tpu.memory_space<vmem>>, vector<2x128xf32>,
    } else {
    }
    %c0 = arith.constant 0 : index
    %c0_1 = arith.constant 0 : index
    %3 = vector.load %arg6[%c0, %c0_1] : memref<2x128xf32, #tpu.memory_space<vmem>>, vector<2x128xf32>
    %c0_2 = arith.constant 0 : index
    %c0_3 = arith.constant 0 : index
    %4 = vector.load %arg2[%c0_2, %c0_3] : memref<2x128xf32, #tpu.memory_space<vmem>>, vector<2x128xf32>
    %5 = tpu.iota {dimensions = array<i32: 1>} : vector<2x128xi32>
    %c24_i32 = arith.constant 24 : i32
    %6 = vector.broadcast %c24_i32 : i32 to vector<2x128xi32>
    %7 = arith.cmpi slt, %5, %6 : vector<2x128xi32>
    %cst = arith.constant 0.000000e+00 : f32
    %8 = vector.broadcast %cst : f32 to vector<2x128xf32>
    %9 = arith.select %7, %4, %8 : vector<2x128xi1>, vector<2x128xf32>
    %10 = arith.mulf %9, %9 : vector<2x128xf32>
    %11 = arith.addf %3, %10 : vector<2x128xf32>
    %c0_4 = arith.constant 0 : index
    %c0_5 = arith.constant 0 : index
    %12 = vector.load %arg3[%c0_4, %c0_5] : memref<2x128xf32, #tpu.memory_space<vmem>>, vector<2x128xf32>
    %13 = tpu.iota {dimensions = array<i32: 1>} : vector<2x128xi32>
    %c40_i32 = arith.constant 40 : i32
    %14 = vector.broadcast %c40_i32 : i32 to vector<2x128xi32>
    %15 = arith.cmpi slt, %13, %14 : vector<2x128xi32>
    %cst_6 = arith.constant 0.000000e+00 : f32
    %16 = vector.broadcast %cst_6 : f32 to vector<2x128xf32>
    %17 = arith.select %15, %12, %16 : vector<2x128xi1>, vector<2x128xf32>
    %18 = arith.mulf %17, %17 : vector<2x128xf32>
    %19 = arith.addf %11, %18 : vector<2x128xf32>
    %c0_7 = arith.constant 0 : index
    %c0_8 = arith.constant 0 : index
    %20 = vector.load %arg6[%c0_7, %c0_8] : memref<2x128xf32, #tpu.memory_space<vmem>>, vector<2x128xf32>
    tpu.vector_store %arg6[%c0_7, %c0_8], %19 {strides = array<i32>} : memref<2x128xf32, #tpu.memory_space<vmem>>, vector<2x128xf32>,
    %c0_i32_9 = arith.constant 0 : i32
    %21 = arith.cmpi eq, %arg1, %c0_i32_9 : i32
    %22 = arith.extui %21 : i1 to i32
    %c0_i32_10 = arith.constant 0 : i32
    %23 = arith.cmpi ne, %22, %c0_i32_10 : i32
    scf.if %23 {
      %c0_11 = arith.constant 0 : index
      %c0_12 = arith.constant 0 : index
      %24 = vector.load %arg6[%c0_11, %c0_12] : memref<2x128xf32, #tpu.memory_space<vmem>>, vector<2x128xf32>
      %cst_13 = arith.constant dense<0.000000e+00> : vector<2xf32>
      %25 = vector.multi_reduction <add>, %24, %cst_13 [1] : vector<2x128xf32> to vector<2xf32>
      %26 = vector.shape_cast %25 : vector<2xf32> to vector<2x1xf32>
      %cst_14 = arith.constant -5.000000e-01 : f32
      %27 = vector.broadcast %cst_14 : f32 to vector<2x1xf32>
      %28 = arith.mulf %27, %26 : vector<2x1xf32>
      %c0_15 = arith.constant 0 : index
      %c0_16 = arith.constant 0 : index
      %29 = vector.load %arg4[%c0_15, %c0_16] : memref<2x1xf32, #tpu.memory_space<vmem>>, vector<2x1xf32>
      %cst_17 = arith.constant 7.35150814 : f32
      %30 = vector.broadcast %cst_17 : f32 to vector<2x1xf32>
      %31 = arith.mulf %30, %29 : vector<2x1xf32>
      %32 = arith.subf %28, %31 : vector<2x1xf32>
      %cst_18 = arith.constant 2.75681567 : f32
      %33 = vector.broadcast %cst_18 : f32 to vector<2x1xf32>
      %34 = arith.addf %32, %33 : vector<2x1xf32>
      %c0_19 = arith.constant 0 : index
      %c0_20 = arith.constant 0 : index
      %35 = vector.load %arg5[%c0_19, %c0_20] : memref<2x1xf32, #tpu.memory_space<vmem>>, vector<2x1xf32>
      tpu.vector_store %arg5[%c0_19, %c0_20], %34 {strides = array<i32>} : memref<2x1xf32, #tpu.memory_space<vmem>>, vector<2x1xf32>,
    } else {
    }
    return
  }
  func.func @transform_0(%arg0: i32, %arg1: i32) -> (i32, i32) {
    %c0_i32 = arith.constant 0 : i32
    return %arg0, %arg1 : i32, i32
  }
  func.func @transform_1(%arg0: i32, %arg1: i32) -> (i32, i32) {
    %c0_i32 = arith.constant 0 : i32
    return %arg0, %arg1 : i32, i32
  }
  func.func @transform_2(%arg0: i32, %arg1: i32) -> (i32, i32) {
    %c0_i32 = arith.constant 0 : i32
    %c0_i32_0 = arith.constant 0 : i32
    return %arg0, %c0_i32 : i32, i32
  }
  func.func @transform_3(%arg0: i32, %arg1: i32) -> (i32, i32) {
    %c0_i32 = arith.constant 0 : i32
    %c0_i32_0 = arith.constant 0 : i32
    return %arg0, %c0_i32 : i32, i32
  }
}

</mosaic_0001>

<llo_original>
// kernel: tpu_custom_call.1
$region0: #{tpu_custom_call.1}
  #allocation0 [shape = 'u32[]', space=smem, size = 0x4, offset = 0x4, fixed_abs, tag = 'smem constant byte address 0x4 - core index']
  #allocation1 [shape = 'u32[144,128]{1,0:T(1,128)}', space=vmem, size = 0x12000, scoped, tag = 'internal scratch']
  #allocation2 [shape = 'f32[2,128]{1,0:T(2,128)}', space=vmem, size = 0x400, scoped, tag = 'scratch operand']
  %s0 = inlined_call_operand.vmem [shape: f32[2,24], index: 0, kind: input, shape index: {}]
  %s1 = inlined_call_operand.vmem [shape: f32[2,40], index: 1, kind: input, shape index: {}]
  %s2 = inlined_call_operand.vmem [shape: f32[2,1], index: 2, kind: input, shape index: {}]
  %s3 = inlined_call_operand.vmem [shape: f32[2,1], index: 3, kind: output, shape index: {}]
  %s4 = sld [smem:[#allocation0]]
  $region30: #{tpu_custom_call.1} parent=0
    _
  %s6 = ssub.s32 1, %s4
  %s7 = scalar_select 0, %s6, %s4
  // Predicated region
  $region2: #{tpu_custom_call.1} parent=0 // pred_check
    _
  $region3: #{tpu_custom_call.1} parent=0 // pred_check_branch
    %9 = sbr.rel (0) target = $region5
  $region4: #{tpu_custom_call.1} parent=0 // pred_region
    _
  $region5: #{tpu_custom_call.1} parent=0 // pred_fallthru
    _
  // Predicated region
  $region6: #{tpu_custom_call.1} parent=0 // pred_check
    _
  $region7: #{tpu_custom_call.1} parent=0 // pred_check_branch
    %11 = sbr.rel (0) target = $region9
  $region8: #{tpu_custom_call.1} parent=0 // pred_region
    _
  $region9: #{tpu_custom_call.1} parent=0 // pred_fallthru
    _
  // Predicated region
  $region10: #{tpu_custom_call.1} parent=0 // pred_check
    _
  $region11: #{tpu_custom_call.1} parent=0 // pred_check_branch
    %13 = sbr.rel (0) target = $region13
  $region12: #{tpu_custom_call.1} parent=0 // pred_region
    _
  $region13: #{tpu_custom_call.1} parent=0 // pred_fallthru
    _
  %p14 = scmp.eq.s32.totalorder 0, 0
  // Predicated region
  $region14: #{tpu_custom_call.1} parent=0 // pred_check
    %p15 = pneg %p14
  $region15: #{tpu_custom_call.1} parent=0 // pred_check_branch
    %17 = sbr.rel (%p15) target = $region17
  $region16: #{tpu_custom_call.1} parent=0 // pred_region
    %18 = vst [vmem:[#allocation2] sm:$0x3] 0.0
  $region17: #{tpu_custom_call.1} parent=0 // pred_fallthru
    _
  %v19 = vld [vmem:[#allocation2] sm:$0x3]
  %v20 = vld [vmem:[%s0] sm:$0x3]
  %v21 = vlaneseq
  %v22 = vand.u32 %v21, 127
  %vm23 = vcmp.lt.s32.totalorder %v22, 24
  %v24 = vsel %vm23, %v20, 0.0
  %v25 = vmul.f32 %v24, %v24
  %v26 = vadd.f32 %v19, %v25
  %v27 = vld [vmem:[%s1] sm:$0x3]
  %vm28 = vcmp.lt.s32.totalorder %v22, 40
  %v29 = vsel %vm28, %v27, 0.0
  %v30 = vmul.f32 %v29, %v29
  %v31 = vadd.f32 %v26, %v30
  %32 = vst [vmem:[#allocation2] sm:$0x3] %v31
  // Predicated region
  $region18: #{tpu_custom_call.1} parent=0 // pred_check
    %p33 = pneg %p14
  $region19: #{tpu_custom_call.1} parent=0 // pred_check_branch
    %35 = sbr.rel (%p33) target = $region21
  $region20: #{tpu_custom_call.1} parent=0 // pred_region
    %v36 = vld [vmem:[#allocation2] sm:$0x3]
    %vm37 = vcmask 1041408
    %v38 = vsel %vm37, %v36, 0.0
    %39 = vadd.xlane.f32.xlu0 %v38
    %v40 = vpop.xlane.xlu0 %39
    %v41 = vmul.f32 %v40, -0.5
    %v42 = vld [vmem:[%s2] sm:$0x3]
    %v43 = vmul.f32 %v42, 7.351508
    %v44 = vsub.f32 %v41, %v43
    %v45 = vadd.f32 %v44, 2.7568157
    %vm46 = vcmask 1024
    %47 = vst.msk [vmem:[%s3] sm:$0x3] %vm46, %v45
  $region21: #{tpu_custom_call.1} parent=0 // pred_fallthru
    _
  // Predicated region
  $region22: #{tpu_custom_call.1} parent=0 // pred_check
    _
  $region23: #{tpu_custom_call.1} parent=0 // pred_check_branch
    %49 = sbr.rel (0) target = $region25
  $region24: #{tpu_custom_call.1} parent=0 // pred_region
    _
  $region25: #{tpu_custom_call.1} parent=0 // pred_fallthru
    _
  // Predicated region
  $region26: #{tpu_custom_call.1} parent=0 // pred_check
    _
  $region27: #{tpu_custom_call.1} parent=0 // pred_check_branch
    %51 = sbr.rel (0) target = $region29
  $region28: #{tpu_custom_call.1} parent=0 // pred_region
    _
  $region29: #{tpu_custom_call.1} parent=0 // pred_fallthru
    _

</llo_original>
